<compile_context>
chip_gen: v5e
topology: v5e:2x2
jax: 0.10.0
libtpu: 0.0.40
codegen_flags: <defaults>
</compile_context>

<pallas_src>
import jax
import jax.numpy as jnp
from jax.experimental import pallas as pl
from jax.experimental.pallas import tpu as pltpu

EPS = 1e-12                              # torch.nn.functional.normalize default eps
LANE = 128                               # output last dim padded to a multiple of this
_RESIDENT_W_BYTES = 12 * 1024 * 1024     # per-K-step weight tile budget (x2 buffers)


def _round_up(x, m):
    return ((x + m - 1) // m) * m


def _device_kind():
    try:
        return jax.devices()[0].device_kind.lower()
    except Exception:
        return ""


def _encoder_normalize_kernel(x_ref, w_ref, b_ref, o_ref, acc_ref):
    k = pl.program_id(1)

    @pl.when(k == 0)
    def _():
        acc_ref[...] = jnp.zeros_like(acc_ref)

    # Linear encoder: h = x @ W  (MXU matmul, f32 accumulation), bias added at the end.
    acc_ref[...] += jnp.dot(x_ref[...], w_ref[...],
                            preferred_element_type=jnp.float32)

    @pl.when(k == pl.num_programs(1) - 1)
    def _():
        h = acc_ref[...] + b_ref[...]            # b is (1, D_out_p), broadcasts over rows
        # F.normalize(dim=-1): h * rsqrt(max(||h||^2, eps^2)) == h / max(||h||, eps).
        # rsqrt runs on the EUP (its own VLIW slot) instead of a multi-op VPU divide.
        sq = jnp.sum(h * h, axis=-1, keepdims=True)
        inv = jax.lax.rsqrt(jnp.maximum(sq, EPS * EPS))
        o_ref[...] = (h * inv).astype(o_ref.dtype)


def make_normalized_encoder(w, b, *, block_b=None, out_dtype=jnp.float32):
    """Build a jitted  x: [B, D_in] -> [B, D_out]  L2-normalized Linear encoder.

    Parameter padding to a lane-dense layout happens ONCE here, not per call.
    """
    D_in, D_out = w.shape
    kind = _device_kind()
    is_v7 = "v7" in kind
    if block_b is None:
        # v7x: only 64 MiB physical VMEM and 2 TensorCores -> smaller row tiles.
        block_b = 256 if is_v7 else 512
    min_b_tiles = 2 if is_v7 else 1          # keep both v7x TensorCores busy

    # Lane-dense output: pad D_out to a multiple of 128 (one-time). Zero-padded
    # weight/bias columns produce zeros in h, so they don't perturb the row L2 norm.
    D_out_p = _round_up(D_out, LANE)

    # K (D_in) tiling so each weight tile stays inside the VMEM budget even when
    # double-buffered (fits v7x's 64 MiB); whole weight stays resident when small.
    w_itemsize = jnp.dtype(w.dtype).itemsize
    if D_in * D_out_p * w_itemsize <= _RESIDENT_W_BYTES:
        tk, num_k = D_in, 1
    else:
        max_tk = max((_RESIDENT_W_BYTES // (D_out_p * w_itemsize)) // LANE * LANE, LANE)
        num_k = pl.cdiv(D_in, max_tk)
        tk = _round_up(pl.cdiv(D_in, num_k), LANE)
        num_k = pl.cdiv(D_in, tk)
    D_in_p = tk * num_k

    # One-time parameter padding (hoisted out of the per-call hot path).
    if (D_in_p, D_out_p) != (D_in, D_out):
        w = jnp.pad(w, ((0, D_in_p - D_in), (0, D_out_p - D_out)))
    if D_out_p != D_out:
        b = jnp.pad(b, (0, D_out_p - D_out))
    b2 = jnp.asarray(b, jnp.float32).reshape(1, D_out_p)

    # 16-bit operands pack 2 rows per sublane: keep row tiles 16-aligned for them.
    sub = 16 if (jnp.dtype(w.dtype).itemsize < 4
                 or jnp.dtype(out_dtype).itemsize < 4) else 8

    @jax.jit
    def _apply(x, w_p, b_p):
        B = x.shape[0]
        row_sub = 16 if (sub == 16 or jnp.dtype(x.dtype).itemsize < 4) else 8
        # Rare case: K was split and D_in is ragged -> pad x along K (zeros are inert).
        if x.shape[1] != D_in_p:
            x = jnp.pad(x, ((0, 0), (0, D_in_p - x.shape[1])))

        # Batch tiling WITHOUT padding: grid = cdiv(B, tb); Pallas masks the ragged
        # last tile's writeback (row-wise op, so stale rows are never stored).
        num_b = max(pl.cdiv(B, block_b), min(min_b_tiles, pl.cdiv(B, row_sub)))
        tb = _round_up(pl.cdiv(B, num_b), row_sub)
        num_b = pl.cdiv(B, tb)

        x_bytes = jnp.dtype(x.dtype).itemsize
        o_bytes = jnp.dtype(out_dtype).itemsize
        # TODO(synk): pipeline_mode=pl.Buffered(1) on the constant-index w/b specs would
        # halve their footprint; budget conservatively for 2 buffers here instead.
        vmem_need = (2 * tk * D_out_p * w_itemsize      # weight tiles (double-buffered)
                     + 2 * tb * tk * x_bytes            # x tiles
                     + 2 * tb * D_out_p * o_bytes       # output tiles
                     + tb * D_out_p * 4                 # f32 accumulator scratch
                     + 2 * 8 * D_out_p * 4)             # bias (padded to sublane tile)
        cap = (56 << 20) if is_v7 else (110 << 20)
        vmem_limit = int(min(max(vmem_need + (4 << 20), 32 << 20), cap))

        out = pl.pallas_call(
            _encoder_normalize_kernel,
            out_shape=jax.ShapeDtypeStruct((B, D_out_p), out_dtype),
            grid_spec=pltpu.PrefetchScalarGridSpec(
                num_scalar_prefetch=0,
                grid=(num_b, num_k),
                in_specs=[
                    # x tile marches over batch rows and K; double-buffered by BlockSpec.
                    pl.BlockSpec((tb, tk), lambda i, k: (i, k)),
                    # Weight/bias: batch-invariant index_maps -> resident across rows.
                    pl.BlockSpec((tk, D_out_p), lambda i, k: (k, 0)),
                    pl.BlockSpec((1, D_out_p), lambda i, k: (0, 0)),
                ],
                out_specs=pl.BlockSpec((tb, D_out_p), lambda i, k: (i, 0)),
                scratch_shapes=[pltpu.VMEM((tb, D_out_p), jnp.float32)],
            ),
            compiler_params=pltpu.CompilerParams(
                # Batch rows are independent (v7x shards them across its 2 TCs);
                # K is the reduction axis -> last and "arbitrary".
                dimension_semantics=("parallel", "arbitrary"),
                vmem_limit_bytes=vmem_limit,
            ),
        )(x, w_p, b_p)

        # Slice only when lane padding exists (no-op path when D_out % 128 == 0).
        if D_out_p != D_out:
            out = out[:, :D_out]
        return out

    def apply(x):
        return _apply(x, w, b2)

    return apply


if __name__ == "__main__":
    key = jax.random.PRNGKey(0)

    def _reference(x, w, b):
        h = x.astype(jnp.float32) @ w.astype(jnp.float32) + b.astype(jnp.float32)
        n = jnp.maximum(jnp.linalg.norm(h, axis=-1, keepdims=True), EPS)
        return h / n

    # Main config: MXU/lane aligned (D_in, D_out multiples of 128), small batch.
    B, D_in, D_out = 16, 128, 128
    k_x, k_w, k_b = jax.random.split(key, 3)
    x = jax.random.normal(k_x, (B, D_in), dtype=jnp.float32)
    w = jax.random.normal(k_w, (D_in, D_out), dtype=jnp.float32) * 0.05
    b = jax.random.normal(k_b, (D_out,), dtype=jnp.float32) * 0.01

    enc = make_normalized_encoder(w, b)
    out = jax.block_until_ready(enc(x))
    ref = _reference(x, w, b)
    assert out.shape == (B, D_out)
    assert bool(jnp.all(jnp.abs(jnp.linalg.norm(out, axis=-1) - 1.0) < 1e-4)), "not unit-norm"
    assert bool(jnp.max(jnp.abs(out - ref)) < 1e-4), "mismatch vs reference (aligned)"

    # Ragged config: exercises lane-padding of D_out and the partial last batch tile.
    B2, D_in2, D_out2 = 13, 96, 80
    x2 = jax.random.normal(k_x, (B2, D_in2), dtype=jnp.float32)
    w2 = jax.random.normal(k_w, (D_in2, D_out2), dtype=jnp.float32) * 0.05
    b2v = jax.random.normal(k_b, (D_out2,), dtype=jnp.float32) * 0.01
    enc2 = make_normalized_encoder(w2, b2v)
    out2 = jax.block_until_ready(enc2(x2))
    ref2 = _reference(x2, w2, b2v)
    assert out2.shape == (B2, D_out2)
    assert bool(jnp.max(jnp.abs(out2 - ref2)) < 1e-4), "mismatch vs reference (ragged)"

    # bf16 I/O smoke test (halves HBM traffic; accumulation stays f32 inside).
    enc_bf16 = make_normalized_encoder(w.astype(jnp.bfloat16), b, out_dtype=jnp.bfloat16)
    out3 = jax.block_until_ready(enc_bf16(x.astype(jnp.bfloat16)))
    assert out3.shape == (B, D_out)
    assert bool(jnp.max(jnp.abs(out3.astype(jnp.float32) - ref)) < 3e-2), "bf16 mismatch"

    print("KERNEL_OK")
</pallas_src>

<mosaic_0001>
module attributes {stable_mosaic.version = 11 : i64} {
  func.func @_encoder_normalize_kernel(%arg0: i32, %arg1: i32, %arg2: memref<16x128xf32, #tpu.memory_space<vmem>>, %arg3: memref<128x128xf32, #tpu.memory_space<vmem>>, %arg4: memref<1x128xf32, #tpu.memory_space<vmem>>, %arg5: memref<16x128xf32, #tpu.memory_space<vmem>>, %arg6: memref<16x128xf32, #tpu.memory_space<vmem>>) attributes {dimension_semantics = [#tpu.dimension_semantics<parallel>, #tpu.dimension_semantics<arbitrary>], iteration_bounds = array<i64: 1, 1>, scalar_prefetch = 0 : i64, scratch_operands = 1 : i64, tpu.core_type = #tpu.core_type<tc>, window_params = [{transform_indices = @transform_0, window_bounds = array<i64: 16, 128>}, {transform_indices = @transform_1, window_bounds = array<i64: 128, 128>}, {pipeline_mode = #tpu.pipeline_mode<synchronous>, transform_indices = @transform_2, window_bounds = array<i64: 1, 128>}, {transform_indices = @transform_3, window_bounds = array<i64: 16, 128>}]} {
    %c0_i32 = arith.constant 0 : i32
    %0 = arith.cmpi eq, %arg1, %c0_i32 : i32
    %1 = arith.extui %0 : i1 to i32
    %c0_i32_0 = arith.constant 0 : i32
    %2 = arith.cmpi ne, %1, %c0_i32_0 : i32
    scf.if %2 {
      %cst_10 = arith.constant 0.000000e+00 : f32
      %12 = vector.broadcast %cst_10 : f32 to vector<16x128xf32>
      %c0_11 = arith.constant 0 : index
      %c0_12 = arith.constant 0 : index
      %13 = vector.load %arg6[%c0_11, %c0_12] : memref<16x128xf32, #tpu.memory_space<vmem>>, vector<16x128xf32>
      tpu.vector_store %arg6[%c0_11, %c0_12], %12 {strides = array<i32>} : memref<16x128xf32, #tpu.memory_space<vmem>>, vector<16x128xf32>,
    } else {
    }
    %c0 = arith.constant 0 : index
    %c0_1 = arith.constant 0 : index
    %3 = vector.load %arg6[%c0, %c0_1] : memref<16x128xf32, #tpu.memory_space<vmem>>, vector<16x128xf32>
    %c0_2 = arith.constant 0 : index
    %c0_3 = arith.constant 0 : index
    %4 = vector.load %arg2[%c0_2, %c0_3] : memref<16x128xf32, #tpu.memory_space<vmem>>, vector<16x128xf32>
    %c0_4 = arith.constant 0 : index
    %c0_5 = arith.constant 0 : index
    %5 = vector.load %arg3[%c0_4, %c0_5] : memref<128x128xf32, #tpu.memory_space<vmem>>, vector<128x128xf32>
    %cst = arith.constant dense<0.000000e+00> : vector<16x128xf32>
    %6 = tpu.matmul %4, %5, %cst {dimension_numbers = #tpu.dot_dimension_numbers<[1], [0], [0], [1], [0, 0, 1, 1], [], []>} : vector<16x128xf32>, vector<128x128xf32>, vector<16x128xf32> -> vector<16x128xf32>
    %7 = arith.addf %3, %6 : vector<16x128xf32>
    %c0_6 = arith.constant 0 : index
    %c0_7 = arith.constant 0 : index
    %8 = vector.load %arg6[%c0_6, %c0_7] : memref<16x128xf32, #tpu.memory_space<vmem>>, vector<16x128xf32>
    tpu.vector_store %arg6[%c0_6, %c0_7], %7 {strides = array<i32>} : memref<16x128xf32, #tpu.memory_space<vmem>>, vector<16x128xf32>,
    %c0_i32_8 = arith.constant 0 : i32
    %9 = arith.cmpi eq, %arg1, %c0_i32_8 : i32
    %10 = arith.extui %9 : i1 to i32
    %c0_i32_9 = arith.constant 0 : i32
    %11 = arith.cmpi ne, %10, %c0_i32_9 : i32
    scf.if %11 {
      %c0_10 = arith.constant 0 : index
      %c0_11 = arith.constant 0 : index
      %12 = vector.load %arg6[%c0_10, %c0_11] : memref<16x128xf32, #tpu.memory_space<vmem>>, vector<16x128xf32>
      %c0_12 = arith.constant 0 : index
      %c0_13 = arith.constant 0 : index
      %13 = vector.load %arg4[%c0_12, %c0_13] : memref<1x128xf32, #tpu.memory_space<vmem>>, vector<1x128xf32>
      %14 = vector.broadcast %13 : vector<1x128xf32> to vector<16x128xf32>
      %15 = arith.addf %12, %14 : vector<16x128xf32>
      %16 = arith.mulf %15, %15 : vector<16x128xf32>
      %cst_14 = arith.constant dense<0.000000e+00> : vector<16xf32>
      %17 = vector.multi_reduction <add>, %16, %cst_14 [1] : vector<16x128xf32> to vector<16xf32>
      %18 = vector.shape_cast %17 : vector<16xf32> to vector<16x1xf32>
      %cst_15 = arith.constant 1.000000e-24 : f32
      %19 = vector.broadcast %cst_15 : f32 to vector<16x1xf32>
      %20 = arith.maximumf %18, %19 : vector<16x1xf32>
      %21 = math.rsqrt %20 : vector<16x1xf32>
      %22 = vector.broadcast %21 : vector<16x1xf32> to vector<16x128xf32>
      %23 = arith.mulf %15, %22 : vector<16x128xf32>
      %c0_16 = arith.constant 0 : index
      %c0_17 = arith.constant 0 : index
      %24 = vector.load %arg5[%c0_16, %c0_17] : memref<16x128xf32, #tpu.memory_space<vmem>>, vector<16x128xf32>
      tpu.vector_store %arg5[%c0_16, %c0_17], %23 {strides = array<i32>} : memref<16x128xf32, #tpu.memory_space<vmem>>, vector<16x128xf32>,
    } else {
    }
    return
  }
  func.func @transform_0(%arg0: i32, %arg1: i32) -> (i32, i32) {
    %c0_i32 = arith.constant 0 : i32
    return %arg0, %arg1 : i32, i32
  }
  func.func @transform_1(%arg0: i32, %arg1: i32) -> (i32, i32) {
    %c0_i32 = arith.constant 0 : i32
    %c0_i32_0 = arith.constant 0 : i32
    return %arg1, %c0_i32 : i32, i32
  }
  func.func @transform_2(%arg0: i32, %arg1: i32) -> (i32, i32) {
    %c0_i32 = arith.constant 0 : i32
    %c0_i32_0 = arith.constant 0 : i32
    %c0_i32_1 = arith.constant 0 : i32
    return %c0_i32, %c0_i32_0 : i32, i32
  }
  func.func @transform_3(%arg0: i32, %arg1: i32) -> (i32, i32) {
    %c0_i32 = arith.constant 0 : i32
    %c0_i32_0 = arith.constant 0 : i32
    return %arg0, %c0_i32 : i32, i32
  }
}

</mosaic_0001>

<llo_original>
// kernel: _apply.1
$region0: #{_apply.1}
  #allocation0 [shape = 'u32[]', space=smem, size = 0x4, offset = 0x4, fixed_abs, tag = 'smem constant byte address 0x4 - core index']
  #allocation1 [shape = 'u32[72,128]{1,0:T(1,128)}', space=vmem, size = 0x9000, scoped, tag = 'internal scratch']
  #allocation2 [shape = 'f32[16,128]{1,0:T(8,128)}', space=vmem, size = 0x2000, scoped, tag = 'scratch operand']
  %s0 = inlined_call_operand.hbm [shape: f32[16,128], index: 0, kind: input, shape index: {}]
  %s1 = inlined_call_operand.hbm [shape: f32[128,128], index: 1, kind: input, shape index: {}]
  %s2 = inlined_call_operand.vmem [shape: f32[1,128], index: 2, kind: input, shape index: {}]
  %s3 = inlined_call_operand.hbm [shape: f32[16,128], index: 3, kind: output, shape index: {}]
  %s4 = sld [smem:[#allocation0]]
  $region38: #{_apply.1} parent=0
    _
  %s6 = ssub.s32 1, %s4
  %s7 = scalar_select 0, %s6, %s4
  $region1: #{_apply.1} parent=0
    #allocation3 [shape = 'u8[8192]{0}', space=vmem, size = 0x2000, scoped, tag = 'input window, operand 0, single buffered']
    #allocation4 [shape = 's32[1]{0}', space=sflag, size = 0x4, scoped, tag = 'scoped memory for _apply.1']
    #allocation5 [shape = 's32[1]{0}', space=sflag, size = 0x4, scoped, tag = 'scoped memory for _apply.1']
    #allocation6 [shape = 'u8[65536]{0}', space=vmem, size = 0x10000, scoped, tag = 'input window, operand 1, single buffered']
    #allocation7 [shape = 's32[1]{0}', space=sflag, size = 0x4, scoped, tag = 'scoped memory for _apply.1']
    #allocation8 [shape = 'u8[8192]{0}', space=vmem, size = 0x2000, scoped, tag = 'output window, operand 0, single buffered']
    %8 = vsyncpa [#allocation4], 0
    %9 = vsyncpa [#allocation7], 0
    %10 = vsyncpa [#allocation5], 0
    // Predicated region
    $region2: #{_apply.1} parent=1 // pred_check
      _
    $region3: #{_apply.1} parent=1 // pred_check_branch
      %12 = sbr.rel (0) target = $region5
    $region4: #{_apply.1} parent=1 // pred_region
      %14 = vsyncadd [#allocation4], 0
      %s15 = sshll.u32 %s0, 4
      %s16 = int_to_ptr.hbm [resolvable:$true] %s15
      %s17 = sshll.u32 [#allocation3], 4
      %s18 = int_to_ptr.vmem [resolvable:$true] %s17
      %23 = dma.hbm_to_vmem [thread:$0]  %s16, 256, %s18, [#allocation4], 128, 128, 8
    $region5: #{_apply.1} parent=1 // pred_fallthru
      _
    // Predicated region
    $region6: #{_apply.1} parent=1 // pred_check
      _
    $region7: #{_apply.1} parent=1 // pred_check_branch
      %25 = sbr.rel (0) target = $region9
    $region8: #{_apply.1} parent=1 // pred_region
      %27 = vsyncadd [#allocation7], 0
      %s28 = sshll.u32 %s1, 4
      %s29 = int_to_ptr.hbm [resolvable:$true] %s28
      %s30 = sshll.u32 [#allocation6], 4
      %s31 = int_to_ptr.vmem [resolvable:$true] %s30
      %36 = dma.hbm_to_vmem [thread:$0]  %s29, 2048, %s31, [#allocation7], 128, 128, 8
    $region9: #{_apply.1} parent=1 // pred_fallthru
      _
    // Predicated region
    $region10: #{_apply.1} parent=1 // pred_check
      _
    $region11: #{_apply.1} parent=1 // pred_check_branch
      %38 = sbr.rel (0) target = $region13
    $region12: #{_apply.1} parent=1 // pred_region
      _
    $region13: #{_apply.1} parent=1 // pred_fallthru
      _
    // Predicated region
    $region14: #{_apply.1} parent=1 // pred_check
      _
    $region15: #{_apply.1} parent=1 // pred_check_branch
      %40 = sbr.rel (0) target = $region17
    $region16: #{_apply.1} parent=1 // pred_region
      %42 = dma.done [#allocation4], 256
    $region17: #{_apply.1} parent=1 // pred_fallthru
      _
    // Predicated region
    $region18: #{_apply.1} parent=1 // pred_check
      _
    $region19: #{_apply.1} parent=1 // pred_check_branch
      %44 = sbr.rel (0) target = $region21
    $region20: #{_apply.1} parent=1 // pred_region
      %46 = dma.done [#allocation7], 2048
    $region21: #{_apply.1} parent=1 // pred_fallthru
      _
    %p47 = scmp.eq.s32.totalorder 0, 0
    // Predicated region
    $region22: #{_apply.1} parent=1 // pred_check
      %p48 = pneg %p47
    $region23: #{_apply.1} parent=1 // pred_check_branch
      %50 = sbr.rel (%p48) target = $region25
    $region24: #{_apply.1} parent=1 // pred_region
      %51 = vst [vmem:[#allocation2] sm:$0xff] 0.0
      %52 = vst [vmem:[#allocation2 + $0x8] sm:$0xff] 0.0
    $region25: #{_apply.1} parent=1 // pred_fallthru
      _
    %v53 = vld [vmem:[#allocation2] sm:$0xff]
    %v54 = vld [vmem:[#allocation2 + $0x8] sm:$0xff]
    %v55 = vld [vmem:[#allocation3] sm:$0xff]
    %v56 = vld [vmem:[#allocation3 + $0x8] sm:$0xff]
    %v57 = vld [vmem:[#allocation6] sm:$0xff]
    %v58 = vld [vmem:[#allocation6 + $0x8] sm:$0xff]
    %v59 = vld [vmem:[#allocation6 + $0x10] sm:$0xff]
    %v60 = vld [vmem:[#allocation6 + $0x18] sm:$0xff]
    %v61 = vld [vmem:[#allocation6 + $0x20] sm:$0xff]
    %v62 = vld [vmem:[#allocation6 + $0x28] sm:$0xff]
    %v63 = vld [vmem:[#allocation6 + $0x30] sm:$0xff]
    %v64 = vld [vmem:[#allocation6 + $0x38] sm:$0xff]
    %v65 = vld [vmem:[#allocation6 + $0x40] sm:$0xff]
    %v66 = vld [vmem:[#allocation6 + $0x48] sm:$0xff]
    %v67 = vld [vmem:[#allocation6 + $0x50] sm:$0xff]
    %v68 = vld [vmem:[#allocation6 + $0x58] sm:$0xff]
    %v69 = vld [vmem:[#allocation6 + $0x60] sm:$0xff]
    %v70 = vld [vmem:[#allocation6 + $0x68] sm:$0xff]
    %v71 = vld [vmem:[#allocation6 + $0x70] sm:$0xff]
    %v72 = vld [vmem:[#allocation6 + $0x78] sm:$0xff]
    %73 = vmatpush.msra.mxu0 %v72
    %74 = vmatpush.msra.mxu0 %v71
    %75 = vmatpush.msra.mxu0 %v70
    %76 = vmatpush.msra.mxu0 %v69
    %77 = vmatpush.msra.mxu0 %v68
    %78 = vmatpush.msra.mxu0 %v67
    %79 = vmatpush.msra.mxu0 %v66
    %80 = vmatpush.msra.mxu0 %v65
    %81 = vmatpush.msra.mxu0 %v64
    %82 = vmatpush.msra.mxu0 %v63
    %83 = vmatpush.msra.mxu0 %v62
    %84 = vmatpush.msra.mxu0 %v61
    %85 = vmatpush.msra.mxu0 %v60
    %86 = vmatpush.msra.mxu0 %v59
    %87 = vmatpush.msra.mxu0 %v58
    %88 = vmatpush.msra.mxu0 %v57
    %89 = vmatmul.f32.gmra.mxu0 %v55
    %v90 = vpop.f32.mrf.mxu0
    %v91 = vadd.f32 0.0, %v90
    %92 = vmatmul.f32.gmra.mxu0 %v56
    %v93 = vpop.f32.mrf.mxu0
    %v94 = vadd.f32 0.0, %v93
    %95 = vdwg.mxu0
    %v96 = vadd.f32 %v53, %v91
    %v97 = vadd.f32 %v54, %v94
    %98 = vst [vmem:[#allocation2] sm:$0xff] %v96
    %99 = vst [vmem:[#allocation2 + $0x8] sm:$0xff] %v97
    // Predicated region
    $region26: #{_apply.1} parent=1 // pred_check
      %p100 = pneg %p47
    $region27: #{_apply.1} parent=1 // pred_check_branch
      %102 = sbr.rel (%p100) target = $region29
    $region28: #{_apply.1} parent=1 // pred_region
      %v103 = vld [vmem:[#allocation2] sm:$0xff]
      %v104 = vld [vmem:[#allocation2 + $0x8] sm:$0xff]
      %v105 = vld [vmem:[%s2] sm:$0x1]
      %v107 = vperm.slane %v105, 0
      %v109 = vadd.f32 %v103, %v107
      %v110 = vadd.f32 %v104, %v107
      %v111 = vmul.f32 %v109, %v109
      %v112 = vmul.f32 %v110, %v110
      %113 = vadd.xlane.f32.xlu0 %v111
      %v114 = vpop.xlane.xlu0 %113
      %115 = vadd.xlane.f32.xlu0 %v112
      %v116 = vpop.xlane.xlu0 %115
      %v117 = vmax.f32 %v114, 1e-24
      %v118 = vmax.f32 %v116, 1e-24
      %v119 = vrsqrt.pop %v117
      %v120 = vmul.f32 %v119, %v117
      %v121 = vmul.f32 %v120, %v119
      %v122 = vmul.f32 0.5, %v121
      %v123 = vsub.f32 1.5, %v122
      %v124 = vmul.f32 %v119, %v123
      %vm125 = vweird.f32 %v117
      %vm126 = vweird.f32 %v119
      %vm127 = vmor %vm125, %vm126
      %v128 = vsel %vm127, %v119, %v124
      %v129 = vrsqrt.pop %v118
      %v130 = vmul.f32 %v129, %v118
      %v131 = vmul.f32 %v130, %v129
      %v132 = vmul.f32 0.5, %v131
      %v133 = vsub.f32 1.5, %v132
      %v134 = vmul.f32 %v129, %v133
      %vm135 = vweird.f32 %v118
      %vm136 = vweird.f32 %v129
      %vm137 = vmor %vm135, %vm136
      %v138 = vsel %vm137, %v129, %v134
      %v139 = vmul.f32 %v109, %v128
      %v140 = vmul.f32 %v110, %v138
      %141 = vst [vmem:[#allocation8] sm:$0xff] %v139
      %142 = vst [vmem:[#allocation8 + $0x8] sm:$0xff] %v140
    $region29: #{_apply.1} parent=1 // pred_fallthru
      _
    // Predicated region
    $region30: #{_apply.1} parent=1 // pred_check
      _
    $region31: #{_apply.1} parent=1 // pred_check_branch
      %144 = sbr.rel (0) target = $region33
    $region32: #{_apply.1} parent=1 // pred_region
      %146 = vsyncadd [#allocation5], 0
      %s147 = sshll.u32 [#allocation8], 4
      %s148 = int_to_ptr.vmem [resolvable:$true] %s147
      %s149 = sshll.u32 %s3, 4
      %s150 = int_to_ptr.hbm [resolvable:$true] %s149
      %155 = dma.vmem_to_hbm [thread:$0]  %s148, 256, %s150, [#allocation5], 128, 128, 8
    $region33: #{_apply.1} parent=1 // pred_fallthru
      _
    // Predicated region
    $region34: #{_apply.1} parent=1 // pred_check
      _
    $region35: #{_apply.1} parent=1 // pred_check_branch
      %157 = sbr.rel (0) target = $region37
    $region36: #{_apply.1} parent=1 // pred_region
      %159 = dma.done [#allocation5], 256
    $region37: #{_apply.1} parent=1 // pred_fallthru
      _
    %160 = vsyncpa [#allocation4], 1
    %161 = vsyncpa [#allocation7], 1
    %162 = vsyncpa [#allocation5], 1

</llo_original>
